<compile_context>
chip_gen: v7x
topology: tpu7x:2x2x1
jax: 0.10.0
libtpu: 0.0.40
codegen_flags: <defaults>
</compile_context>

<pallas_src>
import functools

import jax
import jax.numpy as jnp
from jax.experimental import pallas as pl
from jax.experimental.pallas import tpu as pltpu

_LANE = 128
_MAX_TB = 65536          # default max batch lanes per block (~3.5 MiB payload)
_NUM_SPLITS = 2          # leading "parallel" grid axis (2 TCs on v7x)
_TINY = 1e-37            # guards rsqrt(0) on zero-padded columns
_PALLAS_MIN_BATCH = 32768  # below this, the fused pure-JAX path is faster


def _cdiv(a, b):
    return -(-a // b)


def _round_up(x, m):
    return _cdiv(x, m) * m


def _pose_loss_kernel(pt_ref, pr_ref, gt_ref, gr_ref, out_ref,
                      acc_t_ref, acc_c_ref):
    j = pl.program_id(1)

    @pl.when(j == 0)
    def _init():
        acc_t_ref[...] = jnp.zeros_like(acc_t_ref)
        acc_c_ref[...] = jnp.zeros_like(acc_c_ref)

    # ---- translation: SmoothL1 (beta=1), elementwise -----------------------
    # Zero-padded batch columns give diff == 0 -> contribute exactly 0.
    diff = pt_ref[...] - gt_ref[...]
    absd = jnp.abs(diff)
    acc_t_ref[...] += jnp.where(absd < 1.0, 0.5 * diff * diff, absd - 0.5)

    # ---- rotation: cos = <qp, qt> / (|qp| |qt|) per batch column -----------
    pr = pr_ref[...]
    gr = gr_ref[...]
    dot = jnp.sum(pr * gr, axis=0, keepdims=True)        # (1, tb)
    n1 = jnp.sum(pr * pr, axis=0, keepdims=True)
    n2 = jnp.sum(gr * gr, axis=0, keepdims=True)
    # Two rsqrts (EUP, free slot) instead of one divide; max(., tiny) makes
    # zero-padded columns land on cos == 0 exactly (no NaN) with no mask.
    inv = jax.lax.rsqrt(jnp.maximum(n1, _TINY)) * jax.lax.rsqrt(
        jnp.maximum(n2, _TINY))
    cos = jnp.clip(dot * inv, -1.0 + 1e-06, 1.0 - 1e-06)
    acc_c_ref[...] += cos

    # ---- finalize: single cross-lane reduce per core-split ------------------
    @pl.when(j == pl.num_programs(1) - 1)
    def _finalize():
        trans_sum = jnp.sum(acc_t_ref[...])               # scalar
        cos_sum = jnp.sum(acc_c_ref[...])                 # scalar
        row = jax.lax.broadcasted_iota(jnp.int32, (1, 8, 128), 1)
        lane = jax.lax.broadcasted_iota(jnp.int32, (1, 8, 128), 2)
        m0 = ((row == 0) & (lane == 0)).astype(jnp.float32)
        m1 = ((row == 0) & (lane == 1)).astype(jnp.float32)
        out_ref[...] = m0 * trans_sum + m1 * cos_sum      # fully defined block


@functools.partial(jax.jit,
                   static_argnames=("max_block_lanes", "inputs_are_feature_major"))
def pose_loss_pallas(pred_trans, pred_rot, gt_trans, gt_rot, *,
                     max_block_lanes=_MAX_TB, inputs_are_feature_major=False):
    """Pallas TPU implementation of PoseLoss.forward."""
    if inputs_are_feature_major:
        dt, B = pred_trans.shape
        dr = pred_rot.shape[0]
    else:
        B, dt = pred_trans.shape
        dr = pred_rot.shape[1]

    # --- block sizing: as many lanes per step as the cap allows, while keeping
    # --- the zero-padding at the tail <= a couple of hundred columns per block.
    max_lanes = max(_LANE, _round_up(int(max_block_lanes), _LANE))
    n_blk = max(1, _cdiv(B, _NUM_SPLITS * max_lanes))     # blocks per core-split
    tb = max(_LANE, _round_up(_cdiv(B, _NUM_SPLITS * n_blk), _LANE))
    bp = _NUM_SPLITS * n_blk * tb                          # padded batch (lanes)

    def to_feature_major(x):
        x = x.astype(jnp.float32)
        if not inputs_are_feature_major:
            x = jnp.transpose(x)                           # (d, B), one fused pass
        return jnp.pad(x, ((0, 0), (0, bp - B)))           # zero-pad batch columns

    pt = to_feature_major(pred_trans)
    pr = to_feature_major(pred_rot)
    gt = to_feature_major(gt_trans)
    gr = to_feature_major(gt_rot)

    def feat_spec(d):
        return pl.BlockSpec((d, tb), lambda c, j: (0, c * n_blk + j))

    # 4 inputs x 2 pipeline buffers + 2 accumulators, each padded to 8 sublanes.
    vmem_need = 10 * 8 * tb * 4
    vmem_limit = int(min(48 * 1024 * 1024,
                         max(16 * 1024 * 1024, (vmem_need * 3) // 2)))

    parts = pl.pallas_call(
        _pose_loss_kernel,
        out_shape=jax.ShapeDtypeStruct((_NUM_SPLITS, 8, 128), jnp.float32),
        grid_spec=pltpu.PrefetchScalarGridSpec(
            num_scalar_prefetch=0,
            grid=(_NUM_SPLITS, n_blk),
            in_specs=[feat_spec(dt), feat_spec(dr), feat_spec(dt), feat_spec(dr)],
            out_specs=pl.BlockSpec((1, 8, 128), lambda c, j: (c, 0, 0)),
            scratch_shapes=[pltpu.VMEM((dt, tb), jnp.float32),   # SmoothL1 partials
                            pltpu.VMEM((1, tb), jnp.float32)]),  # cosine partials
        compiler_params=pltpu.CompilerParams(
            dimension_semantics=("parallel", "arbitrary"),
            vmem_limit_bytes=vmem_limit),
    )(pt, pr, gt, gr)

    # Combine the per-core partial sums and form the means (true counts only;
    # padded columns contributed exactly 0 to both sums).
    trans_sum = jnp.sum(parts[:, 0, 0])
    cos_sum = jnp.sum(parts[:, 0, 1])
    trans_loss = trans_sum / jnp.float32(B * dt)
    rot_loss = 1.0 - cos_sum / jnp.float32(B)
    total_loss = trans_loss + rot_loss
    return total_loss, {"trans_loss": trans_loss, "rot_loss": rot_loss}


# ----------------------------- pure-JAX reference ----------------------------
@jax.jit
def _pose_loss_reference(pred_trans, pred_rot, gt_trans, gt_rot):
    pred_trans = pred_trans.astype(jnp.float32)
    pred_rot = pred_rot.astype(jnp.float32)
    gt_trans = gt_trans.astype(jnp.float32)
    gt_rot = gt_rot.astype(jnp.float32)
    diff = pred_trans - gt_trans
    absd = jnp.abs(diff)
    trans_loss = jnp.mean(jnp.where(absd < 1.0, 0.5 * diff * diff, absd - 0.5))
    qp = pred_rot / jnp.linalg.norm(pred_rot, axis=1, keepdims=True)
    qt = gt_rot / jnp.linalg.norm(gt_rot, axis=1, keepdims=True)
    cos = jnp.clip(jnp.sum(qp * qt, axis=1), -1.0 + 1e-06, 1.0 - 1e-06)
    rot_loss = 1.0 - jnp.mean(cos)
    return trans_loss + rot_loss, trans_loss, rot_loss


def pose_loss(pred_trans, pred_rot, gt_trans, gt_rot, *, use_pallas=None):
    """Dispatcher: fused pure-JAX for small batches, Pallas kernel for large."""
    B = pred_trans.shape[0]
    if use_pallas is None:
        use_pallas = B >= _PALLAS_MIN_BATCH
    if use_pallas:
        return pose_loss_pallas(pred_trans, pred_rot, gt_trans, gt_rot)
    total, trans_l, rot_l = _pose_loss_reference(pred_trans, pred_rot,
                                                 gt_trans, gt_rot)
    return total, {"trans_loss": trans_l, "rot_loss": rot_l}


if __name__ == "__main__":
    key = jax.random.PRNGKey(0)
    k1, k2, k3, k4, k5, k6, k7, k8 = jax.random.split(key, 8)

    # Small shapes consistent with the module: translation dim 3, quaternion 4.
    B = 8
    pred_trans = jax.random.normal(k1, (B, 3), dtype=jnp.float32)
    gt_trans = jax.random.normal(k2, (B, 3), dtype=jnp.float32)
    pred_rot = jax.random.normal(k3, (B, 4), dtype=jnp.float32)
    gt_rot = jax.random.normal(k4, (B, 4), dtype=jnp.float32)

    total, parts = pose_loss_pallas(pred_trans, pred_rot, gt_trans, gt_rot)
    (total, parts) = jax.block_until_ready((total, parts))
    ref_total, ref_t, ref_r = _pose_loss_reference(pred_trans, pred_rot,
                                                   gt_trans, gt_rot)
    assert jnp.allclose(total, ref_total, rtol=1e-4, atol=1e-5)
    assert jnp.allclose(parts["trans_loss"], ref_t, rtol=1e-4, atol=1e-5)
    assert jnp.allclose(parts["rot_loss"], ref_r, rtol=1e-4, atol=1e-5)

    # Second check: force several grid steps (both core-split rows, multi-block
    # accumulation, zero-padded tail) with a small block size.
    B2 = 300
    pt2 = jax.random.normal(k5, (B2, 3), dtype=jnp.float32)
    gt2 = jax.random.normal(k6, (B2, 3), dtype=jnp.float32)
    pr2 = jax.random.normal(k7, (B2, 4), dtype=jnp.float32)
    gr2 = jax.random.normal(k8, (B2, 4), dtype=jnp.float32)
    total2, parts2 = pose_loss_pallas(pt2, pr2, gt2, gr2, max_block_lanes=128)
    (total2, parts2) = jax.block_until_ready((total2, parts2))
    ref2_total, ref2_t, ref2_r = _pose_loss_reference(pt2, pr2, gt2, gr2)
    assert jnp.allclose(total2, ref2_total, rtol=1e-4, atol=1e-5)
    assert jnp.allclose(parts2["trans_loss"], ref2_t, rtol=1e-4, atol=1e-5)
    assert jnp.allclose(parts2["rot_loss"], ref2_r, rtol=1e-4, atol=1e-5)

    print("KERNEL_OK")
</pallas_src>

<mosaic_0001>
module attributes {stable_mosaic.version = 11 : i64} {
  func.func @_pose_loss_kernel(%arg0: i32, %arg1: i32, %arg2: memref<3x128xf32, #tpu.memory_space<vmem>>, %arg3: memref<4x128xf32, #tpu.memory_space<vmem>>, %arg4: memref<3x128xf32, #tpu.memory_space<vmem>>, %arg5: memref<4x128xf32, #tpu.memory_space<vmem>>, %arg6: memref<1x8x128xf32, #tpu.memory_space<vmem>>, %arg7: memref<3x128xf32, #tpu.memory_space<vmem>>, %arg8: memref<1x128xf32, #tpu.memory_space<vmem>>) attributes {dimension_semantics = [#tpu.dimension_semantics<parallel>, #tpu.dimension_semantics<arbitrary>], iteration_bounds = array<i64: 2, 1>, scalar_prefetch = 0 : i64, scratch_operands = 2 : i64, tpu.core_type = #tpu.core_type<tc>, window_params = [{transform_indices = @transform_0, window_bounds = array<i64: 3, 128>}, {transform_indices = @transform_1, window_bounds = array<i64: 4, 128>}, {transform_indices = @transform_2, window_bounds = array<i64: 3, 128>}, {transform_indices = @transform_3, window_bounds = array<i64: 4, 128>}, {transform_indices = @transform_4, window_bounds = array<i64: 1, 8, 128>}]} {
    %c0_i32 = arith.constant 0 : i32
    %0 = arith.cmpi eq, %arg1, %c0_i32 : i32
    %1 = arith.extui %0 : i1 to i32
    %c0_i32_0 = arith.constant 0 : i32
    %2 = arith.cmpi ne, %1, %c0_i32_0 : i32
    scf.if %2 {
      %cst_27 = arith.constant 0.000000e+00 : f32
      %47 = vector.broadcast %cst_27 : f32 to vector<3x128xf32>
      %c0_28 = arith.constant 0 : index
      %c0_29 = arith.constant 0 : index
      %48 = vector.load %arg7[%c0_28, %c0_29] : memref<3x128xf32, #tpu.memory_space<vmem>>, vector<3x128xf32>
      tpu.vector_store %arg7[%c0_28, %c0_29], %47 {strides = array<i32>} : memref<3x128xf32, #tpu.memory_space<vmem>>, vector<3x128xf32>,
      %cst_30 = arith.constant 0.000000e+00 : f32
      %49 = vector.broadcast %cst_30 : f32 to vector<1x128xf32>
      %c0_31 = arith.constant 0 : index
      %c0_32 = arith.constant 0 : index
      %50 = vector.load %arg8[%c0_31, %c0_32] : memref<1x128xf32, #tpu.memory_space<vmem>>, vector<1x128xf32>
      tpu.vector_store %arg8[%c0_31, %c0_32], %49 {strides = array<i32>} : memref<1x128xf32, #tpu.memory_space<vmem>>, vector<1x128xf32>,
    } else {
    }
    %c0 = arith.constant 0 : index
    %c0_1 = arith.constant 0 : index
    %3 = vector.load %arg2[%c0, %c0_1] : memref<3x128xf32, #tpu.memory_space<vmem>>, vector<3x128xf32>
    %c0_2 = arith.constant 0 : index
    %c0_3 = arith.constant 0 : index
    %4 = vector.load %arg4[%c0_2, %c0_3] : memref<3x128xf32, #tpu.memory_space<vmem>>, vector<3x128xf32>
    %5 = arith.subf %3, %4 : vector<3x128xf32>
    %6 = math.absf %5 : vector<3x128xf32>
    %c0_4 = arith.constant 0 : index
    %c0_5 = arith.constant 0 : index
    %7 = vector.load %arg7[%c0_4, %c0_5] : memref<3x128xf32, #tpu.memory_space<vmem>>, vector<3x128xf32>
    %cst = arith.constant 1.000000e+00 : f32
    %8 = vector.broadcast %cst : f32 to vector<3x128xf32>
    %9 = arith.cmpf olt, %6, %8 : vector<3x128xf32>
    %cst_6 = arith.constant 5.000000e-01 : f32
    %10 = vector.broadcast %cst_6 : f32 to vector<3x128xf32>
    %11 = arith.mulf %10, %5 : vector<3x128xf32>
    %12 = arith.mulf %11, %5 : vector<3x128xf32>
    %cst_7 = arith.constant 5.000000e-01 : f32
    %13 = vector.broadcast %cst_7 : f32 to vector<3x128xf32>
    %14 = arith.subf %6, %13 : vector<3x128xf32>
    %15 = arith.select %9, %12, %14 : vector<3x128xi1>, vector<3x128xf32>
    %16 = arith.addf %7, %15 : vector<3x128xf32>
    %c0_8 = arith.constant 0 : index
    %c0_9 = arith.constant 0 : index
    %17 = vector.load %arg7[%c0_8, %c0_9] : memref<3x128xf32, #tpu.memory_space<vmem>>, vector<3x128xf32>
    tpu.vector_store %arg7[%c0_8, %c0_9], %16 {strides = array<i32>} : memref<3x128xf32, #tpu.memory_space<vmem>>, vector<3x128xf32>,
    %c0_10 = arith.constant 0 : index
    %c0_11 = arith.constant 0 : index
    %18 = vector.load %arg3[%c0_10, %c0_11] : memref<4x128xf32, #tpu.memory_space<vmem>>, vector<4x128xf32>
    %c0_12 = arith.constant 0 : index
    %c0_13 = arith.constant 0 : index
    %19 = vector.load %arg5[%c0_12, %c0_13] : memref<4x128xf32, #tpu.memory_space<vmem>>, vector<4x128xf32>
    %20 = arith.mulf %18, %19 : vector<4x128xf32>
    %cst_14 = arith.constant dense<0.000000e+00> : vector<128xf32>
    %21 = vector.multi_reduction <add>, %20, %cst_14 [0] : vector<4x128xf32> to vector<128xf32>
    %22 = vector.shape_cast %21 : vector<128xf32> to vector<1x128xf32>
    %23 = arith.mulf %18, %18 : vector<4x128xf32>
    %cst_15 = arith.constant dense<0.000000e+00> : vector<128xf32>
    %24 = vector.multi_reduction <add>, %23, %cst_15 [0] : vector<4x128xf32> to vector<128xf32>
    %25 = vector.shape_cast %24 : vector<128xf32> to vector<1x128xf32>
    %26 = arith.mulf %19, %19 : vector<4x128xf32>
    %cst_16 = arith.constant dense<0.000000e+00> : vector<128xf32>
    %27 = vector.multi_reduction <add>, %26, %cst_16 [0] : vector<4x128xf32> to vector<128xf32>
    %28 = vector.shape_cast %27 : vector<128xf32> to vector<1x128xf32>
    %cst_17 = arith.constant 9.99999991E-38 : f32
    %29 = vector.broadcast %cst_17 : f32 to vector<1x128xf32>
    %30 = arith.maximumf %25, %29 : vector<1x128xf32>
    %31 = math.rsqrt %30 : vector<1x128xf32>
    %cst_18 = arith.constant 9.99999991E-38 : f32
    %32 = vector.broadcast %cst_18 : f32 to vector<1x128xf32>
    %33 = arith.maximumf %28, %32 : vector<1x128xf32>
    %34 = math.rsqrt %33 : vector<1x128xf32>
    %35 = arith.mulf %31, %34 : vector<1x128xf32>
    %36 = arith.mulf %22, %35 : vector<1x128xf32>
    %cst_19 = arith.constant -0.999998986 : f32
    %cst_20 = arith.constant 0.999998986 : f32
    %37 = vector.broadcast %cst_19 : f32 to vector<1x128xf32>
    %38 = arith.maximumf %37, %36 : vector<1x128xf32>
    %39 = vector.broadcast %cst_20 : f32 to vector<1x128xf32>
    %40 = arith.minimumf %39, %38 : vector<1x128xf32>
    %c0_21 = arith.constant 0 : index
    %c0_22 = arith.constant 0 : index
    %41 = vector.load %arg8[%c0_21, %c0_22] : memref<1x128xf32, #tpu.memory_space<vmem>>, vector<1x128xf32>
    %42 = arith.addf %41, %40 : vector<1x128xf32>
    %c0_23 = arith.constant 0 : index
    %c0_24 = arith.constant 0 : index
    %43 = vector.load %arg8[%c0_23, %c0_24] : memref<1x128xf32, #tpu.memory_space<vmem>>, vector<1x128xf32>
    tpu.vector_store %arg8[%c0_23, %c0_24], %42 {strides = array<i32>} : memref<1x128xf32, #tpu.memory_space<vmem>>, vector<1x128xf32>,
    %c0_i32_25 = arith.constant 0 : i32
    %44 = arith.cmpi eq, %arg1, %c0_i32_25 : i32
    %45 = arith.extui %44 : i1 to i32
    %c0_i32_26 = arith.constant 0 : i32
    %46 = arith.cmpi ne, %45, %c0_i32_26 : i32
    scf.if %46 {
      %c0_27 = arith.constant 0 : index
      %c0_28 = arith.constant 0 : index
      %47 = vector.load %arg7[%c0_27, %c0_28] : memref<3x128xf32, #tpu.memory_space<vmem>>, vector<3x128xf32>
      %48 = vector.shape_cast %47 : vector<3x128xf32> to vector<1x3x128xf32>
      %cst_29 = arith.constant dense<0.000000e+00> : vector<1xf32>
      %49 = vector.multi_reduction <add>, %48, %cst_29 [1, 2] : vector<1x3x128xf32> to vector<1xf32>
      %50 = vector.shape_cast %49 : vector<1xf32> to vector<1x1x1xf32>
      %51 = vector.extract %50[0, 0, 0] : f32 from vector<1x1x1xf32>
      %c0_30 = arith.constant 0 : index
      %c0_31 = arith.constant 0 : index
      %52 = vector.load %arg8[%c0_30, %c0_31] : memref<1x128xf32, #tpu.memory_space<vmem>>, vector<1x128xf32>
      %53 = vector.shape_cast %52 : vector<1x128xf32> to vector<1x1x128xf32>
      %cst_32 = arith.constant dense<0.000000e+00> : vector<1xf32>
      %54 = vector.multi_reduction <add>, %53, %cst_32 [1, 2] : vector<1x1x128xf32> to vector<1xf32>
      %55 = vector.shape_cast %54 : vector<1xf32> to vector<1x1x1xf32>
      %56 = vector.extract %55[0, 0, 0] : f32 from vector<1x1x1xf32>
      %57 = tpu.iota {dimensions = array<i32: 1>} : vector<1x8x128xi32>
      %58 = tpu.iota {dimensions = array<i32: 2>} : vector<1x8x128xi32>
      %c0_i32_33 = arith.constant 0 : i32
      %59 = vector.broadcast %c0_i32_33 : i32 to vector<1x8x128xi32>
      %60 = arith.cmpi eq, %57, %59 : vector<1x8x128xi32>
      %c0_i32_34 = arith.constant 0 : i32
      %61 = vector.broadcast %c0_i32_34 : i32 to vector<1x8x128xi32>
      %62 = arith.cmpi eq, %58, %61 : vector<1x8x128xi32>
      %63 = arith.andi %60, %62 : vector<1x8x128xi1>
      %64 = arith.extui %63 : vector<1x8x128xi1> to vector<1x8x128xi32>
      %65 = arith.sitofp %64 : vector<1x8x128xi32> to vector<1x8x128xf32>
      %c0_i32_35 = arith.constant 0 : i32
      %66 = vector.broadcast %c0_i32_35 : i32 to vector<1x8x128xi32>
      %67 = arith.cmpi eq, %57, %66 : vector<1x8x128xi32>
      %c1_i32 = arith.constant 1 : i32
      %68 = vector.broadcast %c1_i32 : i32 to vector<1x8x128xi32>
      %69 = arith.cmpi eq, %58, %68 : vector<1x8x128xi32>
      %70 = arith.andi %67, %69 : vector<1x8x128xi1>
      %71 = arith.extui %70 : vector<1x8x128xi1> to vector<1x8x128xi32>
      %72 = arith.sitofp %71 : vector<1x8x128xi32> to vector<1x8x128xf32>
      %73 = vector.broadcast %51 : f32 to vector<1x8x128xf32>
      %74 = arith.mulf %65, %73 : vector<1x8x128xf32>
      %75 = vector.broadcast %56 : f32 to vector<1x8x128xf32>
      %76 = arith.mulf %72, %75 : vector<1x8x128xf32>
      %77 = arith.addf %74, %76 : vector<1x8x128xf32>
      %c0_36 = arith.constant 0 : index
      %c0_37 = arith.constant 0 : index
      %c0_38 = arith.constant 0 : index
      %78 = vector.load %arg6[%c0_36, %c0_37, %c0_38] : memref<1x8x128xf32, #tpu.memory_space<vmem>>, vector<1x8x128xf32>
      tpu.vector_store %arg6[%c0_36, %c0_37, %c0_38], %77 {strides = array<i32>} : memref<1x8x128xf32, #tpu.memory_space<vmem>>, vector<1x8x128xf32>,
    } else {
    }
    return
  }
  func.func @transform_0(%arg0: i32, %arg1: i32) -> (i32, i32) {
    %c1_i32 = arith.constant 1 : i32
    %0 = arith.muli %arg0, %c1_i32 : i32
    %1 = arith.addi %0, %arg1 : i32
    %c0_i32 = arith.constant 0 : i32
    %c0_i32_0 = arith.constant 0 : i32
    return %c0_i32, %1 : i32, i32
  }
  func.func @transform_1(%arg0: i32, %arg1: i32) -> (i32, i32) {
    %c1_i32 = arith.constant 1 : i32
    %0 = arith.muli %arg0, %c1_i32 : i32
    %1 = arith.addi %0, %arg1 : i32
    %c0_i32 = arith.constant 0 : i32
    %c0_i32_0 = arith.constant 0 : i32
    return %c0_i32, %1 : i32, i32
  }
  func.func @transform_2(%arg0: i32, %arg1: i32) -> (i32, i32) {
    %c1_i32 = arith.constant 1 : i32
    %0 = arith.muli %arg0, %c1_i32 : i32
    %1 = arith.addi %0, %arg1 : i32
    %c0_i32 = arith.constant 0 : i32
    %c0_i32_0 = arith.constant 0 : i32
    return %c0_i32, %1 : i32, i32
  }
  func.func @transform_3(%arg0: i32, %arg1: i32) -> (i32, i32) {
    %c1_i32 = arith.constant 1 : i32
    %0 = arith.muli %arg0, %c1_i32 : i32
    %1 = arith.addi %0, %arg1 : i32
    %c0_i32 = arith.constant 0 : i32
    %c0_i32_0 = arith.constant 0 : i32
    return %c0_i32, %1 : i32, i32
  }
  func.func @transform_4(%arg0: i32, %arg1: i32) -> (i32, i32, i32) {
    %c0_i32 = arith.constant 0 : i32
    %c0_i32_0 = arith.constant 0 : i32
    %c0_i32_1 = arith.constant 0 : i32
    return %arg0, %c0_i32, %c0_i32_0 : i32, i32, i32
  }
}

</mosaic_0001>

<llo_original>
// kernel: pose_loss_pallas.1
$region0: #{pose_loss_pallas.1}
  #allocation0 [shape = 'u32[]', space=smem, size = 0x4, offset = 0x4, fixed_abs, tag = 'smem constant byte address 0x4 - core index']
  #allocation1 [shape = 'u32[144,128]{1,0:T(1,128)}', space=vmem, size = 0x12000, scoped, tag = 'internal scratch']
  #allocation2 [shape = 'f32[3,128]{1,0:T(4,128)}', space=vmem, size = 0x800, scoped, tag = 'scratch operand']
  #allocation3 [shape = 'f32[1,128]{1,0:T(1,128)}', space=vmem, size = 0x200, scoped, tag = 'scratch operand']
  %s0 = inlined_call_operand.vmem [shape: f32[3,256], index: 0, kind: input, shape index: {}]
  %s1 = inlined_call_operand.vmem [shape: f32[4,256], index: 1, kind: input, shape index: {}]
  %s2 = inlined_call_operand.vmem [shape: f32[3,256], index: 2, kind: input, shape index: {}]
  %s3 = inlined_call_operand.vmem [shape: f32[4,256], index: 3, kind: input, shape index: {}]
  %s4 = inlined_call_operand.vmem [shape: f32[2,8,128], index: 4, kind: output, shape index: {}]
  %s5 = sld [smem:[#allocation0]]
  $region57: #{pose_loss_pallas.1} parent=0
    _
  %s7 = ssub.s32 1, %s5
  %s8 = scalar_select 0, %s7, %s5
  loop: start=0, step=1, limit=4
  $region2: #{pose_loss_pallas.1} parent=0 // loop_pre_header
    _
  $region3: #{pose_loss_pallas.1} parent=0 // loop_header
    %s10 = sphi 0, %s14
    %p11 = scmp.ge.s32.totalorder %s10, 4
    %s17 = sphi 0, %s29
    %s18 = sphi 0, %s25
    %s19 = sphi 0, %s17
    %s20 = sphi 0, %s18
    %s21 = sphi 0, %s19
    %s22 = sphi 0, %s20
    %s34 = sphi 0, %s36
    %s37 = sphi 0, %s34
    %s38 = sphi 0, %s37
    %s54 = sphi 0, %s38
    %s62 = sphi 0, %s64
    %s65 = sphi 0, %s62
    %s66 = sphi 0, %s65
    %s82 = sphi 0, %s66
    %s90 = sphi 0, %s92
    %s93 = sphi 0, %s90
    %s94 = sphi 0, %s93
    %s110 = sphi 0, %s94
    %s118 = sphi 0, %s120
    %s121 = sphi 0, %s118
    %s122 = sphi 0, %s121
    %s138 = sphi 0, %s122
    %s144 = sphi 0, %s146
    %s147 = sphi 0, %s144
    %s148 = sphi 0, %s147
    %s164 = sphi 0, %s148
  $region4: #{pose_loss_pallas.1} parent=0 // loop_header_branch
    %13 = sbr.rel (%p11) target = $region8
  $region5: #{pose_loss_pallas.1} parent=0 // loop_body
    %s15 = ssub.s32 %s10, 1
    %s16 = ssub.s32 %s10, 2
    %s23 = sadd.s32 1, %s18
    %p24 = scmp.ge.s32.totalorder %s23, 1
    %s25 = scalar_select %p24, 0, %s23
    %s26 = sadd.s32 1, %s17
    %s27 = scalar_select %p24, %s26, %s17
    %p28 = scmp.ge.s32.totalorder %s27, 2
    %s29 = scalar_select %p28, 0, %s27
    %s30 = sadd.s32 %s17, %s18
    %s31 = sadd.s32 %s29, %s25
    %s32 = ssub.s32 %s30, %s31
    %p33 = scmp.eq.s32.totalorder %s32, 0
    %s35 = sadd.s32 %s34, 1
    %s36 = scalar_select %p33, %s34, %s35
    %p39 = pneg %p33
    %p40 = scmp.eq.s32.totalorder %s10, 1
    %p41 = por %p39, %p40
    %p42 = scmp.ne.s32.totalorder %s34, %s37
    %p43 = scmp.eq.s32.totalorder %s10, 0
    %p44 = por %p42, %p43
    %p45 = scmp.ne.s32.totalorder %s34, %s37
    %p46 = scmp.eq.s32.totalorder %s15, 1
    %p47 = por %p45, %p46
    %p48 = scmp.ne.s32.totalorder %s37, %s38
    %p49 = scmp.eq.s32.totalorder %s15, 0
    %p50 = por %p48, %p49
    %p51 = scmp.ne.s32.totalorder %s37, %s38
    %p52 = scmp.eq.s32.totalorder %s16, 1
    %p53 = por %p51, %p52
    %p55 = scmp.ne.s32.totalorder %s38, %s54
    %p56 = scmp.eq.s32.totalorder %s16, 0
    %p57 = por %p55, %p56
    %s58 = sadd.s32 %s17, %s18
    %s59 = sadd.s32 %s29, %s25
    %s60 = ssub.s32 %s58, %s59
    %p61 = scmp.eq.s32.totalorder %s60, 0
    %s63 = sadd.s32 %s62, 1
    %s64 = scalar_select %p61, %s62, %s63
    %p67 = pneg %p61
    %p68 = scmp.eq.s32.totalorder %s10, 1
    %p69 = por %p67, %p68
    %p70 = scmp.ne.s32.totalorder %s62, %s65
    %p71 = scmp.eq.s32.totalorder %s10, 0
    %p72 = por %p70, %p71
    %p73 = scmp.ne.s32.totalorder %s62, %s65
    %p74 = scmp.eq.s32.totalorder %s15, 1
    %p75 = por %p73, %p74
    %p76 = scmp.ne.s32.totalorder %s65, %s66
    %p77 = scmp.eq.s32.totalorder %s15, 0
    %p78 = por %p76, %p77
    %p79 = scmp.ne.s32.totalorder %s65, %s66
    %p80 = scmp.eq.s32.totalorder %s16, 1
    %p81 = por %p79, %p80
    %p83 = scmp.ne.s32.totalorder %s66, %s82
    %p84 = scmp.eq.s32.totalorder %s16, 0
    %p85 = por %p83, %p84
    %s86 = sadd.s32 %s17, %s18
    %s87 = sadd.s32 %s29, %s25
    %s88 = ssub.s32 %s86, %s87
    %p89 = scmp.eq.s32.totalorder %s88, 0
    %s91 = sadd.s32 %s90, 1
    %s92 = scalar_select %p89, %s90, %s91
    %p95 = pneg %p89
    %p96 = scmp.eq.s32.totalorder %s10, 1
    %p97 = por %p95, %p96
    %p98 = scmp.ne.s32.totalorder %s90, %s93
    %p99 = scmp.eq.s32.totalorder %s10, 0
    %p100 = por %p98, %p99
    %p101 = scmp.ne.s32.totalorder %s90, %s93
    %p102 = scmp.eq.s32.totalorder %s15, 1
    %p103 = por %p101, %p102
    %p104 = scmp.ne.s32.totalorder %s93, %s94
    %p105 = scmp.eq.s32.totalorder %s15, 0
    %p106 = por %p104, %p105
    %p107 = scmp.ne.s32.totalorder %s93, %s94
    %p108 = scmp.eq.s32.totalorder %s16, 1
    %p109 = por %p107, %p108
    %p111 = scmp.ne.s32.totalorder %s94, %s110
    %p112 = scmp.eq.s32.totalorder %s16, 0
    %p113 = por %p111, %p112
    %s114 = sadd.s32 %s17, %s18
    %s115 = sadd.s32 %s29, %s25
    %s116 = ssub.s32 %s114, %s115
    %p117 = scmp.eq.s32.totalorder %s116, 0
    %s119 = sadd.s32 %s118, 1
    %s120 = scalar_select %p117, %s118, %s119
    %p123 = pneg %p117
    %p124 = scmp.eq.s32.totalorder %s10, 1
    %p125 = por %p123, %p124
    %p126 = scmp.ne.s32.totalorder %s118, %s121
    %p127 = scmp.eq.s32.totalorder %s10, 0
    %p128 = por %p126, %p127
    %p129 = scmp.ne.s32.totalorder %s118, %s121
    %p130 = scmp.eq.s32.totalorder %s15, 1
    %p131 = por %p129, %p130
    %p132 = scmp.ne.s32.totalorder %s121, %s122
    %p133 = scmp.eq.s32.totalorder %s15, 0
    %p134 = por %p132, %p133
    %p135 = scmp.ne.s32.totalorder %s121, %s122
    %p136 = scmp.eq.s32.totalorder %s16, 1
    %p137 = por %p135, %p136
    %p139 = scmp.ne.s32.totalorder %s122, %s138
    %p140 = scmp.eq.s32.totalorder %s16, 0
    %p141 = por %p139, %p140
    %s142 = ssub.s32 %s17, %s29
    %p143 = scmp.eq.s32.totalorder %s142, 0
    %s145 = sadd.s32 %s144, 1
    %s146 = scalar_select %p143, %s144, %s145
    %p149 = pneg %p143
    %p150 = scmp.eq.s32.totalorder %s10, 1
    %p151 = por %p149, %p150
    %p152 = scmp.ne.s32.totalorder %s144, %s147
    %p153 = scmp.eq.s32.totalorder %s10, 0
    %p154 = por %p152, %p153
    %p155 = scmp.ne.s32.totalorder %s144, %s147
    %p156 = scmp.eq.s32.totalorder %s15, 1
    %p157 = por %p155, %p156
    %p158 = scmp.ne.s32.totalorder %s147, %s148
    %p159 = scmp.eq.s32.totalorder %s15, 0
    %p160 = por %p158, %p159
    %p161 = scmp.ne.s32.totalorder %s147, %s148
    %p162 = scmp.eq.s32.totalorder %s16, 1
    %p163 = por %p161, %p162
    %p165 = scmp.ne.s32.totalorder %s148, %s164
    %p166 = scmp.eq.s32.totalorder %s16, 0
    %p167 = por %p165, %p166
    %p168 = scmp.le.s32.totalorder 1, %s10
    %p169 = scmp.lt.s32.totalorder %s10, 3
    %p170 = pnand %p168, %p169
    %p171 = pneg %p170
    // Predicated region
    $region9: #{pose_loss_pallas.1} parent=5 // pred_check
      _
    $region10: #{pose_loss_pallas.1} parent=5 // pred_check_branch
      %173 = sbr.rel (%p170) target = $region12
    $region11: #{pose_loss_pallas.1} parent=5 // pred_region
      %s174 = ssub.s32 %s10, 1
    $region12: #{pose_loss_pallas.1} parent=5 // pred_fallthru
      _
    %p175 = scmp.lt.s32.totalorder %s10, 2
    // Predicated region
    $region13: #{pose_loss_pallas.1} parent=5 // pred_check
      %p176 = pneg %p175
    $region14: #{pose_loss_pallas.1} parent=5 // pred_check_branch
      %178 = sbr.rel (%p176) target = $region16
    $region15: #{pose_loss_pallas.1} parent=5 // pred_region
      // Predicated region
      $region17: #{pose_loss_pallas.1} parent=15 // pred_check
        %p179 = pneg %p44
      $region18: #{pose_loss_pallas.1} parent=15 // pred_check_branch
        %181 = sbr.rel (%p179) target = $region20
      $region19: #{pose_loss_pallas.1} parent=15 // pred_region
        %s182 = sadd.s32 %s17, %s18
        %p183 = scmp.lt.s32.totalorder %s182, 1
        %s184 = scalar_select %p183, %s182, 1
        %s185 = smul.addr %s184, 4
        %s186 = scalar_lea.vmem %s0, %s185
        %s187 = sadd.s32 %s17, %s18
      $region20: #{pose_loss_pallas.1} parent=15 // pred_fallthru
        _
      // Predicated region
      $region21: #{pose_loss_pallas.1} parent=15 // pred_check
        %p188 = pneg %p72
      $region22: #{pose_loss_pallas.1} parent=15 // pred_check_branch
        %190 = sbr.rel (%p188) target = $region24
      $region23: #{pose_loss_pallas.1} parent=15 // pred_region
        %s191 = sadd.s32 %s17, %s18
        %p192 = scmp.lt.s32.totalorder %s191, 1
        %s193 = scalar_select %p192, %s191, 1
        %s194 = smul.addr %s193, 4
        %s195 = scalar_lea.vmem %s1, %s194
        %s196 = sadd.s32 %s17, %s18
      $region24: #{pose_loss_pallas.1} parent=15 // pred_fallthru
        _
      // Predicated region
      $region25: #{pose_loss_pallas.1} parent=15 // pred_check
        %p197 = pneg %p100
      $region26: #{pose_loss_pallas.1} parent=15 // pred_check_branch
        %199 = sbr.rel (%p197) target = $region28
      $region27: #{pose_loss_pallas.1} parent=15 // pred_region
        %s200 = sadd.s32 %s17, %s18
        %p201 = scmp.lt.s32.totalorder %s200, 1
        %s202 = scalar_select %p201, %s200, 1
        %s203 = smul.addr %s202, 4
        %s204 = scalar_lea.vmem %s2, %s203
        %s205 = sadd.s32 %s17, %s18
      $region28: #{pose_loss_pallas.1} parent=15 // pred_fallthru
        _
      // Predicated region
      $region29: #{pose_loss_pallas.1} parent=15 // pred_check
        %p206 = pneg %p128
      $region30: #{pose_loss_pallas.1} parent=15 // pred_check_branch
        %208 = sbr.rel (%p206) target = $region32
      $region31: #{pose_loss_pallas.1} parent=15 // pred_region
        %s209 = sadd.s32 %s17, %s18
        %p210 = scmp.lt.s32.totalorder %s209, 1
        %s211 = scalar_select %p210, %s209, 1
        %s212 = smul.addr %s211, 4
        %s213 = scalar_lea.vmem %s3, %s212
        %s214 = sadd.s32 %s17, %s18
      $region32: #{pose_loss_pallas.1} parent=15 // pred_fallthru
        _
    $region16: #{pose_loss_pallas.1} parent=5 // pred_fallthru
      _
    %p215 = scmp.le.s32.totalorder 1, %s10
    %p216 = scmp.lt.s32.totalorder %s10, 3
    %p217 = pnand %p215, %p216
    %p218 = pneg %p217
    // Predicated region
    $region33: #{pose_loss_pallas.1} parent=5 // pred_check
      _
    $region34: #{pose_loss_pallas.1} parent=5 // pred_check_branch
      %220 = sbr.rel (%p217) target = $region36
    $region35: #{pose_loss_pallas.1} parent=5 // pred_region
      %s221 = ssub.s32 %s10, 1
      %s222 = sadd.s32 %s19, %s20
      %p223 = scmp.lt.s32.totalorder %s222, 1
      %s224 = scalar_select %p223, %s222, 1
      %s225 = smul.addr %s224, 4
      %s226 = scalar_lea.vmem %s0, %s225
      %p227 = pneg %p50
      %p228 = pneg %p47
      %s229 = sadd.s32 %s19, %s20
      %p230 = scmp.lt.s32.totalorder %s229, 1
      %s231 = scalar_select %p230, %s229, 1
      %s232 = smul.addr %s231, 4
      %s233 = scalar_lea.vmem %s1, %s232
      %p234 = pneg %p78
      %p235 = pneg %p75
      %s236 = sadd.s32 %s19, %s20
      %p237 = scmp.lt.s32.totalorder %s236, 1
      %s238 = scalar_select %p237, %s236, 1
      %s239 = smul.addr %s238, 4
      %s240 = scalar_lea.vmem %s2, %s239
      %p241 = pneg %p106
      %p242 = pneg %p103
      %s243 = sadd.s32 %s19, %s20
      %p244 = scmp.lt.s32.totalorder %s243, 1
      %s245 = scalar_select %p244, %s243, 1
      %s246 = smul.addr %s245, 4
      %s247 = scalar_lea.vmem %s3, %s246
      %p248 = pneg %p134
      %p249 = pneg %p131
      %p250 = pneg %p160
      %p251 = pneg %p157
      %p252 = scmp.lt.s32.totalorder %s19, 1
      %s253 = scalar_select %p252, %s19, 1
      %s254 = smul.addr %s253, 8
      %s255 = scalar_lea.vmem %s4, %s254
      %s256 = sadd.s32 %s19, %s20
      %p257 = scmp.lt.s32.totalorder %s256, 1
      %s258 = scalar_select %p257, %s256, 1
      %s259 = smul.addr %s258, 4
      %s260 = scalar_lea.vmem %s0, %s259
      %s261 = sadd.s32 %s19, %s20
      %s262 = sadd.s32 %s19, %s20
      %p263 = scmp.lt.s32.totalorder %s262, 1
      %s264 = scalar_select %p263, %s262, 1
      %s265 = smul.addr %s264, 4
      %s266 = scalar_lea.vmem %s1, %s265
      %s267 = sadd.s32 %s19, %s20
      %s268 = sadd.s32 %s19, %s20
      %p269 = scmp.lt.s32.totalorder %s268, 1
      %s270 = scalar_select %p269, %s268, 1
      %s271 = smul.addr %s270, 4
      %s272 = scalar_lea.vmem %s2, %s271
      %s273 = sadd.s32 %s19, %s20
      %s274 = sadd.s32 %s19, %s20
      %p275 = scmp.lt.s32.totalorder %s274, 1
      %s276 = scalar_select %p275, %s274, 1
      %s277 = smul.addr %s276, 4
      %s278 = scalar_lea.vmem %s3, %s277
      %s279 = sadd.s32 %s19, %s20
      %p280 = scmp.lt.s32.totalorder %s19, 1
      %s281 = scalar_select %p280, %s19, 1
      %s282 = smul.addr %s281, 8
      %s283 = scalar_lea.vmem %s4, %s282
      %p284 = scmp.eq.s32.totalorder %s20, 0
      // Predicated region
      $region37: #{pose_loss_pallas.1} parent=35 // pred_check
        %p285 = pneg %p284
      $region38: #{pose_loss_pallas.1} parent=35 // pred_check_branch
        %287 = sbr.rel (%p285) target = $region40
      $region39: #{pose_loss_pallas.1} parent=35 // pred_region
        %288 = vst [vmem:[#allocation2] sm:$0x7] 0.0
        %289 = vst [vmem:[#allocation3] sm:$0x1] 0.0
      $region40: #{pose_loss_pallas.1} parent=35 // pred_fallthru
        _
      %v290 = vld [vmem:[%s260] sm:$0x7]
      %v291 = vld [vmem:[%s272] sm:$0x7]
      %v292 = vsub.f32 %v290, %v291
      %v293 = vand.u32 2147483647, %v292
      %v294 = vld [vmem:[#allocation2] sm:$0x7]
      %vm295 = vcmp.lt.f32.partialorder %v293, 1.0
      %v296 = vmul.f32 %v292, 0.5
      %v297 = vmul.f32 %v296, %v292
      %v298 = vsub.f32 %v293, 0.5
      %v299 = vsel %vm295, %v297, %v298
      %v300 = vadd.f32 %v294, %v299
      %301 = vst [vmem:[#allocation2] sm:$0x7] %v300
      %v302 = vld [vmem:[%s266] sm:$0xf]
      %v303 = vld [vmem:[%s278] sm:$0xf]
      %v304 = vmul.f32 %v302, %v303
      %vm305 = vcmask 1043456
      %v306 = vsel %vm305, %v304, 0.0
      %v307 = vrot.slane %v306, 4
      %v308 = vadd.f32 %v306, %v307
      %v309 = vrot.slane %v308, 2
      %v310 = vadd.f32 %v308, %v309
      %v311 = vrot.slane %v310, 1
      %v312 = vadd.f32 %v310, %v311
      %v313 = vmul.f32 %v302, %v302
      %v314 = vsel %vm305, %v313, 0.0
      %v315 = vrot.slane %v314, 4
      %v316 = vadd.f32 %v314, %v315
      %v317 = vrot.slane %v316, 2
      %v318 = vadd.f32 %v316, %v317
      %v319 = vrot.slane %v318, 1
      %v320 = vadd.f32 %v318, %v319
      %v321 = vmul.f32 %v303, %v303
      %v322 = vsel %vm305, %v321, 0.0
      %v323 = vrot.slane %v322, 4
      %v324 = vadd.f32 %v322, %v323
      %v325 = vrot.slane %v324, 2
      %v326 = vadd.f32 %v324, %v325
      %v327 = vrot.slane %v326, 1
      %v328 = vadd.f32 %v326, %v327
      %v329 = vmax.f32 %v320, 1e-37
      %v330 = vrsqrt.pop %v329
      %v331 = vmax.f32 %v328, 1e-37
      %v332 = vrsqrt.pop %v331
      %v333 = vmul.f32 %v330, %v332
      %v334 = vmul.f32 %v312, %v333
      %v335 = vmax.f32 %v334, -0.999999
      %v336 = vmin.f32 %v335, 0.999999
      %v337 = vld [vmem:[#allocation3] sm:$0x1]
      %v338 = vadd.f32 %v337, %v336
      %339 = vst [vmem:[#allocation3] sm:$0x1] %v338
      // Predicated region
      $region41: #{pose_loss_pallas.1} parent=35 // pred_check
        %p340 = pneg %p284
      $region42: #{pose_loss_pallas.1} parent=35 // pred_check_branch
        %342 = sbr.rel (%p340) target = $region44
      $region43: #{pose_loss_pallas.1} parent=35 // pred_region
        %v343 = vld [vmem:[#allocation2] sm:$0x7]
        %vm344 = vcmask 1042432
        %v345 = vsel %vm344, %v343, 0.0
        %346 = vadd.xlane.f32.xlu0 %v345
        %v347 = vpop.xlane.xlu0 %346
        %v348 = vrot.slane %v347, 4
        %v349 = vadd.f32 %v347, %v348
        %v350 = vrot.slane %v349, 2
        %v351 = vadd.f32 %v349, %v350
        %v352 = vrot.slane %v351, 1
        %v353 = vadd.f32 %v351, %v352
        %s354 = vtos %v353
        %v355 = vld [vmem:[#allocation3] sm:$0x1]
        %vm356 = vcmask 1040384
        %v357 = vsel %vm356, %v355, 0.0
        %358 = vadd.xlane.f32.xlu0 %v357
        %v359 = vpop.xlane.xlu0 %358
        %v360 = vrot.slane %v359, 4
        %v361 = vadd.f32 %v359, %v360
        %v362 = vrot.slane %v361, 2
        %v363 = vadd.f32 %v361, %v362
        %v364 = vrot.slane %v363, 1
        %v365 = vadd.f32 %v363, %v364
        %s366 = vtos %v365
        %v367 = vlaneseq
        %v368 = vshrl.u32 %v367, 7
        %v369 = vlaneseq
        %v370 = vand.u32 %v369, 127
        %vm371 = vcmp.eq.s32.totalorder %v368, 0
        %vm372 = vcmp.eq.s32.totalorder %v370, 0
        %vm373 = vmand %vm371, %vm372
        %v374 = vsel %vm373, 1, 0
        %v375 = vcvt.s32.f32 %v374
        %vm376 = vcmp.eq.s32.totalorder %v370, 1
        %vm377 = vmand %vm371, %vm376
        %v378 = vsel %vm377, 1, 0
        %v379 = vcvt.s32.f32 %v378
        %v380 = vstv %s354
        %v381 = vmul.f32 %v375, %v380
        %v382 = vstv %s366
        %v383 = vmul.f32 %v379, %v382
        %v384 = vadd.f32 %v381, %v383
        %385 = vst [vmem:[%s283] sm:$0xff] %v384
      $region44: #{pose_loss_pallas.1} parent=35 // pred_fallthru
        _
      %p386 = scmp.lt.s32.totalorder %s19, 1
      %s387 = scalar_select %p386, %s19, 1
      %s388 = smul.addr %s387, 8
      %s389 = scalar_lea.vmem %s4, %s388
      // Predicated region
      $region45: #{pose_loss_pallas.1} parent=35 // pred_check
        %p390 = pneg %p157
      $region46: #{pose_loss_pallas.1} parent=35 // pred_check_branch
        %392 = sbr.rel (%p390) target = $region48
      $region47: #{pose_loss_pallas.1} parent=35 // pred_region
        _
      $region48: #{pose_loss_pallas.1} parent=35 // pred_fallthru
        _
    $region36: #{pose_loss_pallas.1} parent=5 // pred_fallthru
      _
    %p393 = scmp.le.s32.totalorder 2, %s10
    // Predicated region
    $region49: #{pose_loss_pallas.1} parent=5 // pred_check
      %p394 = pneg %p393
    $region50: #{pose_loss_pallas.1} parent=5 // pred_check_branch
      %396 = sbr.rel (%p394) target = $region52
    $region51: #{pose_loss_pallas.1} parent=5 // pred_region
      %s397 = ssub.s32 %s10, 2
      // Predicated region
      $region53: #{pose_loss_pallas.1} parent=51 // pred_check
        %p398 = pneg %p163
      $region54: #{pose_loss_pallas.1} parent=51 // pred_check_branch
        %400 = sbr.rel (%p398) target = $region56
      $region55: #{pose_loss_pallas.1} parent=51 // pred_region
        %p401 = scmp.lt.s32.totalorder %s21, 1
        %s402 = scalar_select %p401, %s21, 1
        %s403 = smul.addr %s402, 8
        %s404 = scalar_lea.vmem %s4, %s403
      $region56: #{pose_loss_pallas.1} parent=51 // pred_fallthru
        _
    $region52: #{pose_loss_pallas.1} parent=5 // pred_fallthru
      _
  $region6: #{pose_loss_pallas.1} parent=0 // loop_footer
    %s14 = sadd.s32 1, %s10
  $region7: #{pose_loss_pallas.1} parent=0 // loop_footer_branch
    %9 = sbr.rel target = $region3
  $region8: #{pose_loss_pallas.1} parent=0 // loop_exit
    _

</llo_original>
